<compile_context>
chip_gen: v6e
topology: v6e:2x2x1
jax: 0.10.0
libtpu: 0.0.40
codegen_flags: <defaults>
</compile_context>

<pallas_src>
import functools

import jax
import jax.numpy as jnp
from jax.experimental import pallas as pl
from jax.experimental.pallas import tpu as pltpu

# ----------------------------- problem sizes --------------------------------
BATCH = 8          # batch size (multiple of 8 sublanes)
HIDDEN = 32        # input feature dim
OUT = 128          # per-sub-model output dim (multiple of 128 lanes)
NUM_MODELS = 3     # number of sub-models in the UberModel


# ------------------------------ Pallas kernel -------------------------------
def uber_kernel(x_ref, wb_ref, o_ref, *, hidden):
    # x_ref : (B, H)        input features
    # wb_ref: (H+1, M*O)    rows 0..H-1 = fused head weights, row H = fused bias
    # o_ref : (B, M*O)      concatenated output (lane-dense, one wide block)
    w = wb_ref[:hidden, :]                 # (H, M*O)
    b = wb_ref[hidden:, :]                 # (1, M*O)
    acc = jnp.dot(x_ref[...], w, preferred_element_type=jnp.float32)  # one MXU matmul
    o_ref[...] = (acc + b).astype(o_ref.dtype)                        # f32 VPU bias add


def uber_model_pallas(x, wb_slab):
    """x: [B, H], wb_slab: [H+1, M*O] -> [B, M*O].

    Equivalent to torch.cat([x @ W_m + b_m for m in range(M)], dim=1),
    with wb_slab[h, m*O + o] = W_m[h, o] for h < H and wb_slab[H, m*O + o] = b_m[o].
    """
    B, H = x.shape
    Hp1, MO = wb_slab.shape
    assert Hp1 == H + 1, (Hp1, H)

    itemsize = jnp.dtype(x.dtype).itemsize
    cost = pl.CostEstimate(
        flops=2 * B * H * MO + B * MO,
        transcendentals=0,
        bytes_accessed=(x.size + wb_slab.size + B * MO) * itemsize,
    )

    return pl.pallas_call(
        functools.partial(uber_kernel, hidden=H),
        out_shape=jax.ShapeDtypeStruct((B, MO), x.dtype),
        in_specs=[
            pl.BlockSpec(memory_space=pltpu.MemorySpace.VMEM),   # x, whole array
            pl.BlockSpec(memory_space=pltpu.MemorySpace.VMEM),   # fused W+b slab
        ],
        out_specs=pl.BlockSpec(memory_space=pltpu.MemorySpace.VMEM),
        cost_estimate=cost,
    )(x, wb_slab)


# --------------------------- deterministic params ---------------------------
def init_params(key):
    """Build raw per-head params AND the canonical fused slab (built once)."""
    kw, kb = jax.random.split(key)
    w_stack = (jax.random.normal(kw, (NUM_MODELS, HIDDEN, OUT), jnp.float32)
               / jnp.sqrt(HIDDEN))
    b_stack = 0.1 * jax.random.normal(kb, (NUM_MODELS, 1, OUT), jnp.float32)

    # Canonical parameter layout (one-time layout plumbing, not per-call):
    #   wb_slab[h, m*OUT + o] = w_stack[m, h, o]   for h < HIDDEN
    #   wb_slab[HIDDEN, m*OUT + o] = b_stack[m, 0, o]
    w_slab = jnp.transpose(w_stack, (1, 0, 2)).reshape(HIDDEN, NUM_MODELS * OUT)
    b_slab = b_stack.reshape(1, NUM_MODELS * OUT)
    wb_slab = jnp.concatenate([w_slab, b_slab], axis=0)     # (HIDDEN+1, M*OUT)
    return wb_slab, (w_stack, b_stack)


def uber_model_ref(x, w_stack, b_stack):
    # pure-JAX reference of: torch.cat([m(x) for m in models], dim=1)
    outs = [x @ w_stack[m] + b_stack[m, 0] for m in range(w_stack.shape[0])]
    return jnp.concatenate(outs, axis=1)


if __name__ == "__main__":
    key = jax.random.PRNGKey(0)
    kx, kp = jax.random.split(key)
    x = jax.random.normal(kx, (BATCH, HIDDEN), jnp.float32)
    wb_slab, (w_stack, b_stack) = init_params(kp)
    wb_slab = jax.block_until_ready(wb_slab)   # slab resident before the call

    out = uber_model_pallas(x, wb_slab)
    out = jax.block_until_ready(out)

    ref = uber_model_ref(x, w_stack, b_stack)
    assert out.shape == (BATCH, NUM_MODELS * OUT), out.shape
    assert jnp.allclose(out, ref, atol=1e-4, rtol=1e-4), "mismatch vs reference"

    print("KERNEL_OK")
</pallas_src>

<mosaic_0001>
module attributes {stable_mosaic.version = 11 : i64} {
  func.func @uber_kernel(%arg0: memref<8x32xf32, #tpu.memory_space<vmem>>, %arg1: memref<33x384xf32, #tpu.memory_space<vmem>>, %arg2: memref<8x384xf32, #tpu.memory_space<vmem>>) attributes {dimension_semantics = [], scalar_prefetch = 0 : i64, scratch_operands = 0 : i64, tpu.core_type = #tpu.core_type<tc>} {
    %c0 = arith.constant 0 : index
    %c0_0 = arith.constant 0 : index
    %0 = vector.load %arg1[%c0, %c0_0] : memref<33x384xf32, #tpu.memory_space<vmem>>, vector<32x384xf32>
    %c32 = arith.constant 32 : index
    %c0_1 = arith.constant 0 : index
    %1 = vector.load %arg1[%c32, %c0_1] : memref<33x384xf32, #tpu.memory_space<vmem>>, vector<1x384xf32>
    %c0_2 = arith.constant 0 : index
    %c0_3 = arith.constant 0 : index
    %2 = vector.load %arg0[%c0_2, %c0_3] : memref<8x32xf32, #tpu.memory_space<vmem>>, vector<8x32xf32>
    %cst = arith.constant dense<0.000000e+00> : vector<8x384xf32>
    %3 = tpu.matmul %2, %0, %cst {dimension_numbers = #tpu.dot_dimension_numbers<[1], [0], [0], [1], [0, 0, 1, 1], [], []>} : vector<8x32xf32>, vector<32x384xf32>, vector<8x384xf32> -> vector<8x384xf32>
    %4 = vector.broadcast %1 : vector<1x384xf32> to vector<8x384xf32>
    %5 = arith.addf %3, %4 : vector<8x384xf32>
    %c0_4 = arith.constant 0 : index
    %c0_5 = arith.constant 0 : index
    %6 = vector.load %arg2[%c0_4, %c0_5] : memref<8x384xf32, #tpu.memory_space<vmem>>, vector<8x384xf32>
    tpu.vector_store %arg2[%c0_4, %c0_5], %5 {strides = array<i32>} : memref<8x384xf32, #tpu.memory_space<vmem>>, vector<8x384xf32>,
    return
  }
}

</mosaic_0001>

<llo_original>
// kernel: tpu_custom_call.1
$region0: #{tpu_custom_call.1}
  #allocation0 [shape = 'u32[]', space=smem, size = 0x4, offset = 0x4, fixed_abs, tag = 'smem constant byte address 0x4 - core index']
  #allocation1 [shape = 'u32[144,128]{1,0:T(1,128)}', space=vmem, size = 0x12000, scoped, tag = 'internal scratch']
  %s0 = inlined_call_operand.hbm [shape: f32[8,32], index: 0, kind: input, shape index: {}]
  %s1 = inlined_call_operand.hbm [shape: f32[33,384], index: 1, kind: input, shape index: {}]
  %s2 = inlined_call_operand.hbm [shape: f32[8,384], index: 2, kind: output, shape index: {}]
  %s3 = sld [smem:[#allocation0]]
  $region26: #{tpu_custom_call.1} parent=0
    _
  %s5 = ssub.s32 1, %s3
  %s6 = scalar_select 0, %s5, %s3
  $region1: #{tpu_custom_call.1} parent=0
    #allocation2 [shape = 'u8[4096]{0}', space=vmem, size = 0x1000, scoped, tag = 'input window, operand 0, single buffered']
    #allocation3 [shape = 's32[1]{0}', space=sflag, size = 0x4, scoped, tag = 'scoped memory for tpu_custom_call.1']
    #allocation4 [shape = 's32[1]{0}', space=sflag, size = 0x4, scoped, tag = 'scoped memory for tpu_custom_call.1']
    #allocation5 [shape = 'u8[61440]{0}', space=vmem, size = 0xf000, scoped, tag = 'input window, operand 1, single buffered']
    #allocation6 [shape = 's32[1]{0}', space=sflag, size = 0x4, scoped, tag = 'scoped memory for tpu_custom_call.1']
    #allocation7 [shape = 'u8[12288]{0}', space=vmem, size = 0x3000, scoped, tag = 'output window, operand 0, single buffered']
    %7 = vsyncpa [#allocation3], 0
    %8 = vsyncpa [#allocation6], 0
    %9 = vsyncpa [#allocation4], 0
    // Predicated region
    $region2: #{tpu_custom_call.1} parent=1 // pred_check
      _
    $region3: #{tpu_custom_call.1} parent=1 // pred_check_branch
      %11 = sbr.rel (0) target = $region5
    $region4: #{tpu_custom_call.1} parent=1 // pred_region
      %s13 = ssub.s32 128, 128
      %14 = vsyncadd [#allocation3], %s13
      %s16 = sshll.u32 [#allocation2], 4
      %s17 = int_to_ptr.vmem [resolvable:$true] %s16
      %19 = dma.hbm_to_vmem [thread:$0]  %s0, 128, %s17, [#allocation3]
    $region5: #{tpu_custom_call.1} parent=1 // pred_fallthru
      _
    // Predicated region
    $region6: #{tpu_custom_call.1} parent=1 // pred_check
      _
    $region7: #{tpu_custom_call.1} parent=1 // pred_check_branch
      %21 = sbr.rel (0) target = $region9
    $region8: #{tpu_custom_call.1} parent=1 // pred_region
      %s23 = ssub.s32 1920, 1920
      %24 = vsyncadd [#allocation6], %s23
      %s25 = sshll.u32 [#allocation5], 4
      %s26 = int_to_ptr.vmem [resolvable:$true] %s25
      %31 = dma.hbm_to_vmem [thread:$0]  %s1, 1920, %s26, [#allocation6], 384, 384, 24
    $region9: #{tpu_custom_call.1} parent=1 // pred_fallthru
      _
    // Predicated region
    $region10: #{tpu_custom_call.1} parent=1 // pred_check
      _
    $region11: #{tpu_custom_call.1} parent=1 // pred_check_branch
      %33 = sbr.rel (0) target = $region13
    $region12: #{tpu_custom_call.1} parent=1 // pred_region
      %34 = dma.done [#allocation3], 128
    $region13: #{tpu_custom_call.1} parent=1 // pred_fallthru
      _
    // Predicated region
    $region14: #{tpu_custom_call.1} parent=1 // pred_check
      _
    $region15: #{tpu_custom_call.1} parent=1 // pred_check_branch
      %36 = sbr.rel (0) target = $region17
    $region16: #{tpu_custom_call.1} parent=1 // pred_region
      %37 = dma.done [#allocation6], 1920
    $region17: #{tpu_custom_call.1} parent=1 // pred_fallthru
      _
    %v38 = vld [vmem:[#allocation5] sm:$0xff]
    %v39 = vld [vmem:[#allocation5 + $0x8] sm:$0xff]
    %v40 = vld [vmem:[#allocation5 + $0x10] sm:$0xff]
    %v41 = vld [vmem:[#allocation5 + $0x18] sm:$0xff]
    %v42 = vld [vmem:[#allocation5 + $0x20] sm:$0xff]
    %v43 = vld [vmem:[#allocation5 + $0x28] sm:$0xff]
    %v44 = vld [vmem:[#allocation5 + $0x30] sm:$0xff]
    %v45 = vld [vmem:[#allocation5 + $0x38] sm:$0xff]
    %v46 = vld [vmem:[#allocation5 + $0x40] sm:$0xff]
    %v47 = vld [vmem:[#allocation5 + $0x48] sm:$0xff]
    %v48 = vld [vmem:[#allocation5 + $0x50] sm:$0xff]
    %v49 = vld [vmem:[#allocation5 + $0x58] sm:$0xff]
    %s50 = scalar_lea.vmem [#allocation5], 96
    %v51 = vld [vmem:[%s50] ss:$8 sm:$0x7]
    %v52 = vld [vmem:[#allocation2] sm:$0xff]
    %v54 = vlaneseq
    %v55 = vshrl.u32 %v54, 7
    %v56 = vsub.s32 0, %v55
    %v57 = vrot.slane %v51, %v56
    %v58 = vlaneseq
    %v59 = vshrl.u32 %v58, 7
    %v60 = vsub.s32 1, %v59
    %v61 = vrot.slane %v51, %v60
    %v62 = vlaneseq
    %v63 = vshrl.u32 %v62, 7
    %v64 = vsub.s32 2, %v63
    %v65 = vrot.slane %v51, %v64
    %vm69 = vcmask 261120
    %v71 = vsel %vm69, %v52, 0
    %73 = vmatprep.subr.mxu0 0.0
    %74 = vmatpush1.msra.mxu0 0.0
    %75 = vmatprep.subr.mxu0 0.0
    %76 = vmatpush1.msra.mxu0 0.0
    %77 = vmatprep.subr.mxu0 0.0
    %78 = vmatpush1.msra.mxu0 0.0
    %79 = vmatprep.subr.mxu0 0.0
    %80 = vmatpush1.msra.mxu0 0.0
    %81 = vmatprep.subr.mxu0 0.0
    %82 = vmatpush1.msra.mxu0 0.0
    %83 = vmatprep.subr.mxu0 0.0
    %84 = vmatpush1.msra.mxu0 0.0
    %85 = vmatprep.subr.mxu0 0.0
    %86 = vmatpush1.msra.mxu0 0.0
    %87 = vmatprep.subr.mxu0 0.0
    %88 = vmatpush1.msra.mxu0 0.0
    %89 = vmatprep.subr.mxu0 0.0
    %90 = vmatpush1.msra.mxu0 0.0
    %91 = vmatprep.subr.mxu0 0.0
    %92 = vmatpush1.msra.mxu0 0.0
    %93 = vmatprep.subr.mxu0 0.0
    %94 = vmatpush1.msra.mxu0 0.0
    %95 = vmatprep.subr.mxu0 0.0
    %96 = vmatpush1.msra.mxu0 0.0
    %97 = vmatprep.subr.mxu0 %v48
    %98 = vmatpush1.msra.mxu0 %v47
    %99 = vmatprep.subr.mxu0 %v45
    %100 = vmatpush1.msra.mxu0 %v44
    %101 = vmatprep.subr.mxu0 %v42
    %102 = vmatpush1.msra.mxu0 %v41
    %103 = vmatprep.subr.mxu0 %v39
    %104 = vmatpush1.msra.mxu0 %v38
    %105 = vmatprep.subr.mxu0 0.0
    %106 = vmatpush2.msra.mxu0 0.0
    %107 = vmatprep.subr.mxu0 0.0
    %108 = vmatpush2.msra.mxu0 0.0
    %109 = vmatprep.subr.mxu0 0.0
    %110 = vmatpush2.msra.mxu0 0.0
    %111 = vmatprep.subr.mxu0 0.0
    %112 = vmatpush2.msra.mxu0 0.0
    %113 = vmatprep.subr.mxu0 0.0
    %114 = vmatpush2.msra.mxu0 0.0
    %115 = vmatprep.subr.mxu0 0.0
    %116 = vmatpush2.msra.mxu0 0.0
    %117 = vmatprep.subr.mxu0 0.0
    %118 = vmatpush2.msra.mxu0 0.0
    %119 = vmatprep.subr.mxu0 0.0
    %120 = vmatpush2.msra.mxu0 0.0
    %121 = vmatprep.subr.mxu0 0.0
    %122 = vmatpush2.msra.mxu0 0.0
    %123 = vmatprep.subr.mxu0 0.0
    %124 = vmatpush2.msra.mxu0 0.0
    %125 = vmatprep.subr.mxu0 0.0
    %126 = vmatpush2.msra.mxu0 0.0
    %127 = vmatprep.subr.mxu0 0.0
    %128 = vmatpush2.msra.mxu0 0.0
    %129 = vmatprep.subr.mxu0 0.0
    %130 = vmatpush2.msra.mxu0 0.0
    %131 = vmatprep.subr.mxu0 0.0
    %132 = vmatpush2.msra.mxu0 0.0
    %133 = vmatprep.subr.mxu0 0.0
    %134 = vmatpush2.msra.mxu0 0.0
    %135 = vmatprep.subr.mxu0 0.0
    %136 = vmatpush2.msra.mxu0 0.0
    %137 = vmatprep.mubr.f32.mxu0 0.0
    %138 = vmatmul.mubr.f32.gmra.mxu0 %v71
    %v139 = vpop.f32.mrf.mxu0
    %v140 = vadd.f32 %v57, %v139
    %v141 = vpop.f32.mrf.mxu0
    %v142 = vadd.f32 %v61, %v141
    %143 = vdwg.mxu0
    %144 = vmatprep.subr.mxu0 0.0
    %145 = vmatpush1.msra.mxu0 0.0
    %146 = vmatprep.subr.mxu0 0.0
    %147 = vmatpush1.msra.mxu0 0.0
    %148 = vmatprep.subr.mxu0 0.0
    %149 = vmatpush1.msra.mxu0 0.0
    %150 = vmatprep.subr.mxu0 0.0
    %151 = vmatpush1.msra.mxu0 0.0
    %152 = vmatprep.subr.mxu0 0.0
    %153 = vmatpush1.msra.mxu0 0.0
    %154 = vmatprep.subr.mxu0 0.0
    %155 = vmatpush1.msra.mxu0 0.0
    %156 = vmatprep.subr.mxu0 0.0
    %157 = vmatpush1.msra.mxu0 0.0
    %158 = vmatprep.subr.mxu0 0.0
    %159 = vmatpush1.msra.mxu0 0.0
    %160 = vmatprep.subr.mxu0 0.0
    %161 = vmatpush1.msra.mxu0 0.0
    %162 = vmatprep.subr.mxu0 0.0
    %163 = vmatpush1.msra.mxu0 0.0
    %164 = vmatprep.subr.mxu0 0.0
    %165 = vmatpush1.msra.mxu0 0.0
    %166 = vmatprep.subr.mxu0 0.0
    %167 = vmatpush1.msra.mxu0 0.0
    %168 = vmatprep.subr.mxu0 0.0
    %169 = vmatpush1.msra.mxu0 %v49
    %170 = vmatprep.subr.mxu0 0.0
    %171 = vmatpush1.msra.mxu0 %v46
    %172 = vmatprep.subr.mxu0 0.0
    %173 = vmatpush1.msra.mxu0 %v43
    %174 = vmatprep.subr.mxu0 0.0
    %175 = vmatpush1.msra.mxu0 %v40
    %176 = vmatprep.subr.mxu0 0.0
    %177 = vmatpush2.msra.mxu0 0.0
    %178 = vmatprep.subr.mxu0 0.0
    %179 = vmatpush2.msra.mxu0 0.0
    %180 = vmatprep.subr.mxu0 0.0
    %181 = vmatpush2.msra.mxu0 0.0
    %182 = vmatprep.subr.mxu0 0.0
    %183 = vmatpush2.msra.mxu0 0.0
    %184 = vmatprep.subr.mxu0 0.0
    %185 = vmatpush2.msra.mxu0 0.0
    %186 = vmatprep.subr.mxu0 0.0
    %187 = vmatpush2.msra.mxu0 0.0
    %188 = vmatprep.subr.mxu0 0.0
    %189 = vmatpush2.msra.mxu0 0.0
    %190 = vmatprep.subr.mxu0 0.0
    %191 = vmatpush2.msra.mxu0 0.0
    %192 = vmatprep.subr.mxu0 0.0
    %193 = vmatpush2.msra.mxu0 0.0
    %194 = vmatprep.subr.mxu0 0.0
    %195 = vmatpush2.msra.mxu0 0.0
    %196 = vmatprep.subr.mxu0 0.0
    %197 = vmatpush2.msra.mxu0 0.0
    %198 = vmatprep.subr.mxu0 0.0
    %199 = vmatpush2.msra.mxu0 0.0
    %200 = vmatprep.subr.mxu0 0.0
    %201 = vmatpush2.msra.mxu0 0.0
    %202 = vmatprep.subr.mxu0 0.0
    %203 = vmatpush2.msra.mxu0 0.0
    %204 = vmatprep.subr.mxu0 0.0
    %205 = vmatpush2.msra.mxu0 0.0
    %206 = vmatprep.subr.mxu0 0.0
    %207 = vmatpush2.msra.mxu0 0.0
    %208 = vmatprep.mubr.f32.mxu0 0.0
    %209 = vmatmul.mubr.f32.gmra.mxu0 %v71
    %v210 = vpop.f32.mrf.mxu0
    %v211 = vadd.f32 %v65, %v210
    %v212 = vpop.f32.mrf.mxu0
    %213 = vdwg.mxu0
    %214 = vst [vmem:[#allocation7] sm:$0xff] %v140
    %215 = vst [vmem:[#allocation7 + $0x8] sm:$0xff] %v142
    %216 = vst [vmem:[#allocation7 + $0x10] sm:$0xff] %v211
    // Predicated region
    $region18: #{tpu_custom_call.1} parent=1 // pred_check
      _
    $region19: #{tpu_custom_call.1} parent=1 // pred_check_branch
      %218 = sbr.rel (0) target = $region21
    $region20: #{tpu_custom_call.1} parent=1 // pred_region
      %s220 = ssub.s32 384, 384
      %221 = vsyncadd [#allocation4], %s220
      %s223 = sshll.u32 [#allocation7], 4
      %s224 = int_to_ptr.vmem [resolvable:$true] %s223
      %226 = dma.vmem_to_hbm [thread:$0]  %s224, 384, %s2, [#allocation4]
    $region21: #{tpu_custom_call.1} parent=1 // pred_fallthru
      _
    // Predicated region
    $region22: #{tpu_custom_call.1} parent=1 // pred_check
      _
    $region23: #{tpu_custom_call.1} parent=1 // pred_check_branch
      %228 = sbr.rel (0) target = $region25
    $region24: #{tpu_custom_call.1} parent=1 // pred_region
      %229 = dma.done [#allocation4], 384
    $region25: #{tpu_custom_call.1} parent=1 // pred_fallthru
      _
    %230 = vsyncpa [#allocation3], 1
    %231 = vsyncpa [#allocation6], 1
    %232 = vsyncpa [#allocation4], 1

</llo_original>
